<compile_context>
chip_gen: v5e
topology: v5e:2x2
jax: 0.10.0
libtpu: 0.0.40
codegen_flags: <defaults>
</compile_context>

<pallas_src>
import jax
import jax.numpy as jnp
from jax.experimental import pallas as pl
from jax.experimental.pallas import tpu as pltpu


def mlp_kernel(xT_ref, w1_ref, b1_ref, w2_ref, b2_ref, o_ref):
    # xT: (8, TB)   w1: (64, 8)   b1: (64, 1)
    # w2: (64, 1)   b2: SMEM (1, 1)   o: (1, TB)
    xT = xT_ref[...]                                           # batch on lanes

    # fc1 + ReLU: (64, 8) @ (8, TB) on the MXU, f32 accumulate.
    h = jnp.dot(w1_ref[...], xT, preferred_element_type=jnp.float32)
    h = jnp.maximum(h + b1_ref[...], 0.0)                      # (64, TB)

    # fc2 with N=1: VPU multiply + XLU sublane reduce (no second MXU round trip).
    y = jnp.sum(h * w2_ref[...], axis=0, keepdims=True)        # (1, TB)
    y = y + b2_ref[0, 0]                                       # scalar bias from SMEM

    o_ref[...] = y.astype(o_ref.dtype)


def regression_model_forward(x, w1, b1, w2, b2, *, tb=1024):
    """Forward pass of RegressionModel.

    x : (B, 8) float32
    w1: (64, 8) float32   (PyTorch fc1.weight layout [out, in])
    b1: (64,)   float32
    w2: (1, 64) float32   (PyTorch fc2.weight layout [out, in])
    b2: (1,)    float32
    returns (B, 1) float32
    """
    assert tb % 128 == 0, "batch tile must be a multiple of 128 (lane axis)"
    B = x.shape[0]
    nb = pl.cdiv(B, tb)
    Bp = nb * tb

    # Transpose so batch is the lane axis; zero-pad ragged tail.
    xT = jnp.pad(x.T.astype(jnp.float32), ((0, 0), (0, Bp - B)))   # (8, Bp)
    b1c = b1.reshape(64, 1).astype(jnp.float32)
    w2c = w2.reshape(64, 1).astype(jnp.float32)                    # column vector
    b2c = b2.reshape(1, 1).astype(jnp.float32)

    yT = pl.pallas_call(
        mlp_kernel,
        out_shape=jax.ShapeDtypeStruct((1, Bp), jnp.float32),
        grid=(nb,),
        in_specs=[
            pl.BlockSpec((8, tb), lambda i: (0, i)),     # x tile, pipelined
            pl.BlockSpec((64, 8), lambda i: (0, 0)),     # w1 resident
            pl.BlockSpec((64, 1), lambda i: (0, 0)),     # b1 resident
            pl.BlockSpec((64, 1), lambda i: (0, 0)),     # w2 resident
            pl.BlockSpec(memory_space=pltpu.MemorySpace.SMEM),  # b2 scalar
        ],
        out_specs=pl.BlockSpec((1, tb), lambda i: (0, i)),
        compiler_params=pltpu.CompilerParams(
            dimension_semantics=("parallel",),           # megacore on v7x
        ),
    )(xT, w1.astype(jnp.float32), b1c, w2c, b2c)

    return yT[:, :B].T                                   # (B, 1), PyTorch contract


def init_params(key):
    # PyTorch nn.Linear default init: U(-1/sqrt(fan_in), 1/sqrt(fan_in)),
    # weights in PyTorch [out, in] layout.
    k1, k2, k3, k4 = jax.random.split(key, 4)
    bound1 = 1.0 / jnp.sqrt(8.0)
    bound2 = 1.0 / jnp.sqrt(64.0)
    w1 = jax.random.uniform(k1, (64, 8), jnp.float32, -bound1, bound1)
    b1 = jax.random.uniform(k2, (64,), jnp.float32, -bound1, bound1)
    w2 = jax.random.uniform(k3, (1, 64), jnp.float32, -bound2, bound2)
    b2 = jax.random.uniform(k4, (1,), jnp.float32, -bound2, bound2)
    return w1, b1, w2, b2


if __name__ == "__main__":
    key = jax.random.PRNGKey(0)
    pkey, xkey = jax.random.split(key)
    w1, b1, w2, b2 = init_params(pkey)

    # Small demo batch chosen to exercise multiple grid tiles + a ragged tail
    # (300 rows, tile 128 -> 3 tiles, padded to 384).
    batch = 300
    x = jax.random.normal(xkey, (batch, 8), jnp.float32)

    out = regression_model_forward(x, w1, b1, w2, b2, tb=128)
    out = jax.block_until_ready(out)

    # Reference in plain JAX (same math as the PyTorch forward).
    ref = jnp.maximum(x @ w1.T + b1, 0.0) @ w2.T + b2
    assert out.shape == (batch, 1)
    assert jnp.allclose(out, ref, atol=1e-5, rtol=1e-5)

    print("KERNEL_OK")
</pallas_src>

<mosaic_0001>
module attributes {stable_mosaic.version = 11 : i64} {
  func.func @mlp_kernel(%arg0: i32, %arg1: memref<8x128xf32, #tpu.memory_space<vmem>>, %arg2: memref<64x8xf32, #tpu.memory_space<vmem>>, %arg3: memref<64x1xf32, #tpu.memory_space<vmem>>, %arg4: memref<64x1xf32, #tpu.memory_space<vmem>>, %arg5: memref<1x1xf32, #tpu.memory_space<smem>>, %arg6: memref<1x128xf32, #tpu.memory_space<vmem>>) attributes {dimension_semantics = [#tpu.dimension_semantics<parallel>], iteration_bounds = array<i64: 3>, scalar_prefetch = 0 : i64, scratch_operands = 0 : i64, tpu.core_type = #tpu.core_type<tc>, window_params = [{transform_indices = @transform_0, window_bounds = array<i64: 8, 128>}, {pipeline_mode = #tpu.pipeline_mode<synchronous>, transform_indices = @transform_1, window_bounds = array<i64: 64, 8>}, {pipeline_mode = #tpu.pipeline_mode<synchronous>, transform_indices = @transform_2, window_bounds = array<i64: 64, 1>}, {pipeline_mode = #tpu.pipeline_mode<synchronous>, transform_indices = @transform_3, window_bounds = array<i64: 64, 1>}, {transform_indices = @transform_4, window_bounds = array<i64: 1, 1>}, {transform_indices = @transform_5, window_bounds = array<i64: 1, 128>}]} {
    %c0 = arith.constant 0 : index
    %c0_0 = arith.constant 0 : index
    %0 = vector.load %arg1[%c0, %c0_0] : memref<8x128xf32, #tpu.memory_space<vmem>>, vector<8x128xf32>
    %c0_1 = arith.constant 0 : index
    %c0_2 = arith.constant 0 : index
    %1 = vector.load %arg2[%c0_1, %c0_2] : memref<64x8xf32, #tpu.memory_space<vmem>>, vector<64x8xf32>
    %cst = arith.constant dense<0.000000e+00> : vector<64x128xf32>
    %2 = tpu.matmul %1, %0, %cst {dimension_numbers = #tpu.dot_dimension_numbers<[1], [0], [0], [1], [0, 0, 1, 1], [], []>} : vector<64x8xf32>, vector<8x128xf32>, vector<64x128xf32> -> vector<64x128xf32>
    %c0_3 = arith.constant 0 : index
    %c0_4 = arith.constant 0 : index
    %3 = vector.load %arg3[%c0_3, %c0_4] : memref<64x1xf32, #tpu.memory_space<vmem>>, vector<64x1xf32>
    %4 = vector.broadcast %3 : vector<64x1xf32> to vector<64x128xf32>
    %5 = arith.addf %2, %4 : vector<64x128xf32>
    %cst_5 = arith.constant 0.000000e+00 : f32
    %6 = vector.broadcast %cst_5 : f32 to vector<64x128xf32>
    %7 = arith.maximumf %5, %6 : vector<64x128xf32>
    %c0_6 = arith.constant 0 : index
    %c0_7 = arith.constant 0 : index
    %8 = vector.load %arg4[%c0_6, %c0_7] : memref<64x1xf32, #tpu.memory_space<vmem>>, vector<64x1xf32>
    %9 = vector.broadcast %8 : vector<64x1xf32> to vector<64x128xf32>
    %10 = arith.mulf %7, %9 : vector<64x128xf32>
    %cst_8 = arith.constant dense<0.000000e+00> : vector<128xf32>
    %11 = vector.multi_reduction <add>, %10, %cst_8 [0] : vector<64x128xf32> to vector<128xf32>
    %12 = vector.shape_cast %11 : vector<128xf32> to vector<1x128xf32>
    %c0_9 = arith.constant 0 : index
    %c0_10 = arith.constant 0 : index
    %13 = memref.load %arg5[%c0_9, %c0_10] : memref<1x1xf32, #tpu.memory_space<smem>>
    %14 = vector.broadcast %13 : f32 to vector<1x128xf32>
    %15 = arith.addf %12, %14 : vector<1x128xf32>
    %c0_11 = arith.constant 0 : index
    %c0_12 = arith.constant 0 : index
    %16 = vector.load %arg6[%c0_11, %c0_12] : memref<1x128xf32, #tpu.memory_space<vmem>>, vector<1x128xf32>
    tpu.vector_store %arg6[%c0_11, %c0_12], %15 {strides = array<i32>} : memref<1x128xf32, #tpu.memory_space<vmem>>, vector<1x128xf32>,
    return
  }
  func.func @transform_0(%arg0: i32) -> (i32, i32) {
    %c0_i32 = arith.constant 0 : i32
    %c0_i32_0 = arith.constant 0 : i32
    return %c0_i32, %arg0 : i32, i32
  }
  func.func @transform_1(%arg0: i32) -> (i32, i32) {
    %c0_i32 = arith.constant 0 : i32
    %c0_i32_0 = arith.constant 0 : i32
    %c0_i32_1 = arith.constant 0 : i32
    return %c0_i32, %c0_i32_0 : i32, i32
  }
  func.func @transform_2(%arg0: i32) -> (i32, i32) {
    %c0_i32 = arith.constant 0 : i32
    %c0_i32_0 = arith.constant 0 : i32
    %c0_i32_1 = arith.constant 0 : i32
    return %c0_i32, %c0_i32_0 : i32, i32
  }
  func.func @transform_3(%arg0: i32) -> (i32, i32) {
    %c0_i32 = arith.constant 0 : i32
    %c0_i32_0 = arith.constant 0 : i32
    %c0_i32_1 = arith.constant 0 : i32
    return %c0_i32, %c0_i32_0 : i32, i32
  }
  func.func @transform_4(%arg0: i32) -> (i32, i32) {
    %c0_i32 = arith.constant 0 : i32
    %c0_i32_0 = arith.constant 0 : i32
    %c0_i32_1 = arith.constant 0 : i32
    return %c0_i32, %c0_i32_0 : i32, i32
  }
  func.func @transform_5(%arg0: i32) -> (i32, i32) {
    %c0_i32 = arith.constant 0 : i32
    %c0_i32_0 = arith.constant 0 : i32
    return %c0_i32, %arg0 : i32, i32
  }
}

</mosaic_0001>

<llo_original>
// kernel: tpu_custom_call.1
$region0: #{tpu_custom_call.1}
  #allocation0 [shape = 'u32[]', space=smem, size = 0x4, offset = 0x4, fixed_abs, tag = 'smem constant byte address 0x4 - core index']
  #allocation1 [shape = 'u32[72,128]{1,0:T(1,128)}', space=vmem, size = 0x9000, scoped, tag = 'internal scratch']
  #allocation2 [shape = 'f32[1,1]{1,0:T(1,128)S(6)}', space=smem, size = 0x200, scoped, tag = 'scoped memory for tpu_custom_call.1']
  %s0 = inlined_call_operand.vmem [shape: f32[8,384], index: 0, kind: input, shape index: {}]
  %s1 = inlined_call_operand.vmem [shape: f32[64,8], index: 1, kind: input, shape index: {}]
  %s2 = inlined_call_operand.vmem [shape: f32[64,1], index: 2, kind: input, shape index: {}]
  %s3 = inlined_call_operand.vmem [shape: f32[64,1], index: 3, kind: input, shape index: {}]
  %s4 = inlined_call_operand.<no memory space> [shape: f32[1,1], index: 4, kind: input, shape index: {}]
  %s5 = inlined_call_operand.hbm [shape: f32[1,384], index: 5, kind: output, shape index: {}]
  %s6 = sld [smem:[#allocation0]]
  $region53: #{tpu_custom_call.1} parent=0
    _
  %s8 = ssub.s32 1, %s6
  %s9 = scalar_select 0, %s8, %s6
  %10 = sst [smem:[#allocation2]] %s4
  $region1: #{tpu_custom_call.1} parent=0
    #allocation3 [shape = 'u8[1024]{0}', space=vmem, size = 0x400, scoped, tag = 'output window, operand 0']
    #allocation4 [shape = 's32[2]{0}', space=sflag, size = 0x8, scoped, tag = 'scoped memory for tpu_custom_call.1']
    %11 = vsyncpa [#allocation4], 0
    %s12 = scalar_lea.sflag [#allocation4], 1
    %13 = vsyncpa %s12, 0
    loop: start=0, step=1, limit=5
    $region2: #{tpu_custom_call.1} parent=1 // loop_pre_header
      _
    $region3: #{tpu_custom_call.1} parent=1 // loop_header
      %s15 = sphi 0, %s19
      %p16 = scmp.ge.s32.totalorder %s15, 5
      %s25 = sphi 0, %s27
      %s28 = sphi 0, %s25
      %s29 = sphi 0, %s28
      %s45 = sphi 0, %s29
      %s49 = sphi 0, %s49
      %s51 = sphi 0, %s49
      %s52 = sphi 0, %s51
      %s66 = sphi 0, %s52
      %s70 = sphi 0, %s70
      %s72 = sphi 0, %s70
      %s73 = sphi 0, %s72
      %s87 = sphi 0, %s73
      %s91 = sphi 0, %s91
      %s93 = sphi 0, %s91
      %s94 = sphi 0, %s93
      %s108 = sphi 0, %s94
      %s112 = sphi 0, %s112
      %s114 = sphi 0, %s112
      %s115 = sphi 0, %s114
      %s129 = sphi 0, %s115
      %s135 = sphi 0, %s137
      %s138 = sphi 0, %s135
      %s139 = sphi 0, %s138
      %s155 = sphi 0, %s139
    $region4: #{tpu_custom_call.1} parent=1 // loop_header_branch
      %18 = sbr.rel (%p16) target = $region8
    $region5: #{tpu_custom_call.1} parent=1 // loop_body
      %s20 = ssub.s32 %s15, 1
      %s21 = ssub.s32 %s15, 2
      %s22 = sadd.s32 %s15, 1
      %s23 = ssub.s32 %s15, %s22
      %p24 = scmp.eq.s32.totalorder %s23, 0
      %s26 = sadd.s32 %s25, 1
      %s27 = scalar_select %p24, %s25, %s26
      %p30 = pneg %p24
      %p31 = scmp.eq.s32.totalorder %s15, 2
      %p32 = por %p30, %p31
      %p33 = scmp.ne.s32.totalorder %s25, %s28
      %p34 = scmp.eq.s32.totalorder %s15, 0
      %p35 = por %p33, %p34
      %p36 = scmp.ne.s32.totalorder %s25, %s28
      %p37 = scmp.eq.s32.totalorder %s20, 2
      %p38 = por %p36, %p37
      %p39 = scmp.ne.s32.totalorder %s28, %s29
      %p40 = scmp.eq.s32.totalorder %s20, 0
      %p41 = por %p39, %p40
      %p42 = scmp.ne.s32.totalorder %s28, %s29
      %p43 = scmp.eq.s32.totalorder %s21, 2
      %p44 = por %p42, %p43
      %p46 = scmp.ne.s32.totalorder %s29, %s45
      %p47 = scmp.eq.s32.totalorder %s21, 0
      %p48 = por %p46, %p47
      %s50 = sadd.s32 %s49, 1
      %p53 = scmp.eq.s32.totalorder %s15, 2
      %p54 = scmp.ne.s32.totalorder %s49, %s51
      %p55 = scmp.eq.s32.totalorder %s15, 0
      %p56 = por %p54, %p55
      %p57 = scmp.ne.s32.totalorder %s49, %s51
      %p58 = scmp.eq.s32.totalorder %s20, 2
      %p59 = por %p57, %p58
      %p60 = scmp.ne.s32.totalorder %s51, %s52
      %p61 = scmp.eq.s32.totalorder %s20, 0
      %p62 = por %p60, %p61
      %p63 = scmp.ne.s32.totalorder %s51, %s52
      %p64 = scmp.eq.s32.totalorder %s21, 2
      %p65 = por %p63, %p64
      %p67 = scmp.ne.s32.totalorder %s52, %s66
      %p68 = scmp.eq.s32.totalorder %s21, 0
      %p69 = por %p67, %p68
      %s71 = sadd.s32 %s70, 1
      %p74 = scmp.eq.s32.totalorder %s15, 2
      %p75 = scmp.ne.s32.totalorder %s70, %s72
      %p76 = scmp.eq.s32.totalorder %s15, 0
      %p77 = por %p75, %p76
      %p78 = scmp.ne.s32.totalorder %s70, %s72
      %p79 = scmp.eq.s32.totalorder %s20, 2
      %p80 = por %p78, %p79
      %p81 = scmp.ne.s32.totalorder %s72, %s73
      %p82 = scmp.eq.s32.totalorder %s20, 0
      %p83 = por %p81, %p82
      %p84 = scmp.ne.s32.totalorder %s72, %s73
      %p85 = scmp.eq.s32.totalorder %s21, 2
      %p86 = por %p84, %p85
      %p88 = scmp.ne.s32.totalorder %s73, %s87
      %p89 = scmp.eq.s32.totalorder %s21, 0
      %p90 = por %p88, %p89
      %s92 = sadd.s32 %s91, 1
      %p95 = scmp.eq.s32.totalorder %s15, 2
      %p96 = scmp.ne.s32.totalorder %s91, %s93
      %p97 = scmp.eq.s32.totalorder %s15, 0
      %p98 = por %p96, %p97
      %p99 = scmp.ne.s32.totalorder %s91, %s93
      %p100 = scmp.eq.s32.totalorder %s20, 2
      %p101 = por %p99, %p100
      %p102 = scmp.ne.s32.totalorder %s93, %s94
      %p103 = scmp.eq.s32.totalorder %s20, 0
      %p104 = por %p102, %p103
      %p105 = scmp.ne.s32.totalorder %s93, %s94
      %p106 = scmp.eq.s32.totalorder %s21, 2
      %p107 = por %p105, %p106
      %p109 = scmp.ne.s32.totalorder %s94, %s108
      %p110 = scmp.eq.s32.totalorder %s21, 0
      %p111 = por %p109, %p110
      %s113 = sadd.s32 %s112, 1
      %p116 = scmp.eq.s32.totalorder %s15, 2
      %p117 = scmp.ne.s32.totalorder %s112, %s114
      %p118 = scmp.eq.s32.totalorder %s15, 0
      %p119 = por %p117, %p118
      %p120 = scmp.ne.s32.totalorder %s112, %s114
      %p121 = scmp.eq.s32.totalorder %s20, 2
      %p122 = por %p120, %p121
      %p123 = scmp.ne.s32.totalorder %s114, %s115
      %p124 = scmp.eq.s32.totalorder %s20, 0
      %p125 = por %p123, %p124
      %p126 = scmp.ne.s32.totalorder %s114, %s115
      %p127 = scmp.eq.s32.totalorder %s21, 2
      %p128 = por %p126, %p127
      %p130 = scmp.ne.s32.totalorder %s115, %s129
      %p131 = scmp.eq.s32.totalorder %s21, 0
      %p132 = por %p130, %p131
      %s133 = ssub.s32 %s15, %s22
      %p134 = scmp.eq.s32.totalorder %s133, 0
      %s136 = sadd.s32 %s135, 1
      %s137 = scalar_select %p134, %s135, %s136
      %p140 = pneg %p134
      %p141 = scmp.eq.s32.totalorder %s15, 2
      %p142 = por %p140, %p141
      %p143 = scmp.ne.s32.totalorder %s135, %s138
      %p144 = scmp.eq.s32.totalorder %s15, 0
      %p145 = por %p143, %p144
      %p146 = scmp.ne.s32.totalorder %s135, %s138
      %p147 = scmp.eq.s32.totalorder %s20, 2
      %p148 = por %p146, %p147
      %p149 = scmp.ne.s32.totalorder %s138, %s139
      %p150 = scmp.eq.s32.totalorder %s20, 0
      %p151 = por %p149, %p150
      %p152 = scmp.ne.s32.totalorder %s138, %s139
      %p153 = scmp.eq.s32.totalorder %s21, 2
      %p154 = por %p152, %p153
      %p156 = scmp.ne.s32.totalorder %s139, %s155
      %p157 = scmp.eq.s32.totalorder %s21, 0
      %p158 = por %p156, %p157
      %p159 = scmp.le.s32.totalorder 1, %s15
      %p160 = scmp.lt.s32.totalorder %s15, 4
      %p161 = pnand %p159, %p160
      %p162 = pneg %p161
      // Predicated region
      $region9: #{tpu_custom_call.1} parent=5 // pred_check
        _
      $region10: #{tpu_custom_call.1} parent=5 // pred_check_branch
        %164 = sbr.rel (%p161) target = $region12
      $region11: #{tpu_custom_call.1} parent=5 // pred_region
        %s165 = ssub.s32 %s15, 1
        // Predicated region
        $region13: #{tpu_custom_call.1} parent=11 // pred_check
          %p166 = pneg %p62
        $region14: #{tpu_custom_call.1} parent=11 // pred_check_branch
          %168 = sbr.rel (%p166) target = $region16
        $region15: #{tpu_custom_call.1} parent=11 // pred_region
          _
        $region16: #{tpu_custom_call.1} parent=11 // pred_fallthru
          _
        // Predicated region
        $region17: #{tpu_custom_call.1} parent=11 // pred_check
          %p169 = pneg %p83
        $region18: #{tpu_custom_call.1} parent=11 // pred_check_branch
          %171 = sbr.rel (%p169) target = $region20
        $region19: #{tpu_custom_call.1} parent=11 // pred_region
          _
        $region20: #{tpu_custom_call.1} parent=11 // pred_fallthru
          _
        // Predicated region
        $region21: #{tpu_custom_call.1} parent=11 // pred_check
          %p172 = pneg %p104
        $region22: #{tpu_custom_call.1} parent=11 // pred_check_branch
          %174 = sbr.rel (%p172) target = $region24
        $region23: #{tpu_custom_call.1} parent=11 // pred_region
          _
        $region24: #{tpu_custom_call.1} parent=11 // pred_fallthru
          _
        // Predicated region
        $region25: #{tpu_custom_call.1} parent=11 // pred_check
          %p175 = pneg %p125
        $region26: #{tpu_custom_call.1} parent=11 // pred_check_branch
          %177 = sbr.rel (%p175) target = $region28
        $region27: #{tpu_custom_call.1} parent=11 // pred_region
          _
        $region28: #{tpu_custom_call.1} parent=11 // pred_fallthru
          _
      $region12: #{tpu_custom_call.1} parent=5 // pred_fallthru
        _
      %p178 = scmp.lt.s32.totalorder %s15, 3
      // Predicated region
      $region29: #{tpu_custom_call.1} parent=5 // pred_check
        %p179 = pneg %p178
      $region30: #{tpu_custom_call.1} parent=5 // pred_check_branch
        %181 = sbr.rel (%p179) target = $region32
      $region31: #{tpu_custom_call.1} parent=5 // pred_region
        // Predicated region
        $region33: #{tpu_custom_call.1} parent=31 // pred_check
          %p182 = pneg %p35
        $region34: #{tpu_custom_call.1} parent=31 // pred_check_branch
          %184 = sbr.rel (%p182) target = $region36
        $region35: #{tpu_custom_call.1} parent=31 // pred_region
          %p185 = scmp.lt.s32.totalorder %s15, 2
          %s186 = scalar_select %p185, %s15, 2
          %s187 = smul.addr %s186, 8
          %s188 = scalar_lea.vmem %s0, %s187
        $region36: #{tpu_custom_call.1} parent=31 // pred_fallthru
          _
      $region32: #{tpu_custom_call.1} parent=5 // pred_fallthru
        _
      %p189 = scmp.le.s32.totalorder 1, %s15
      %p190 = scmp.lt.s32.totalorder %s15, 4
      %p191 = pnand %p189, %p190
      %p192 = pneg %p191
      // Predicated region
      $region37: #{tpu_custom_call.1} parent=5 // pred_check
        _
      $region38: #{tpu_custom_call.1} parent=5 // pred_check_branch
        %194 = sbr.rel (%p191) target = $region40
      $region39: #{tpu_custom_call.1} parent=5 // pred_region
        %s195 = ssub.s32 %s15, 1
        %p196 = scmp.lt.s32.totalorder %s20, 2
        %s197 = scalar_select %p196, %s20, 2
        %s198 = smul.addr %s197, 8
        %s199 = scalar_lea.vmem %s0, %s198
        %p200 = pneg %p41
        %p201 = pneg %p38
        %p202 = pneg %p62
        %p203 = pneg %p59
        %p204 = pneg %p83
        %p205 = pneg %p80
        %p206 = pneg %p104
        %p207 = pneg %p101
        %p208 = pneg %p125
        %p209 = pneg %p122
        %p210 = pneg %p151
        %p211 = pneg %p148
        %s212 = sand.u32 %s138, 1
        %s213 = scalar_lea.sflag [#allocation4], %s212
        %s214 = sand.u32 %s138, 1
        %s215 = scalar_lea.vmem [#allocation3], %s214
        %p216 = scmp.lt.s32.totalorder %s20, 2
        %s217 = scalar_select %p216, %s20, 2
        %s218 = smul.addr %s217, 8
        %s219 = scalar_lea.vmem %s0, %s218
        %v220 = vld [vmem:[%s219] sm:$0xff]
        %v221 = vld [vmem:[%s1] sm:$0xff]
        %v222 = vld [vmem:[%s1 + $0x8] sm:$0xff]
        %v223 = vld [vmem:[%s1 + $0x10] sm:$0xff]
        %v224 = vld [vmem:[%s1 + $0x18] sm:$0xff]
        %v225 = vld [vmem:[%s1 + $0x20] sm:$0xff]
        %v226 = vld [vmem:[%s1 + $0x28] sm:$0xff]
        %v227 = vld [vmem:[%s1 + $0x30] sm:$0xff]
        %v228 = vld [vmem:[%s1 + $0x38] sm:$0xff]
        %v229 = vld [vmem:[%s2] sm:$0xff]
        %v230 = vld [vmem:[%s2 + $0x8] sm:$0xff]
        %v231 = vld [vmem:[%s2 + $0x10] sm:$0xff]
        %v232 = vld [vmem:[%s2 + $0x18] sm:$0xff]
        %v233 = vld [vmem:[%s2 + $0x20] sm:$0xff]
        %v234 = vld [vmem:[%s2 + $0x28] sm:$0xff]
        %v235 = vld [vmem:[%s2 + $0x30] sm:$0xff]
        %v236 = vld [vmem:[%s2 + $0x38] sm:$0xff]
        %238 = vset.pattern.permute.xlu0 0
        %239 = vperm.xlu0 %238, %v229
        %v240 = vpop.permute.xlu0 %239
        %243 = vset.pattern.permute.xlu0 0
        %244 = vperm.xlu0 %243, %v230
        %v245 = vpop.permute.xlu0 %244
        %248 = vset.pattern.permute.xlu0 0
        %249 = vperm.xlu0 %248, %v231
        %v250 = vpop.permute.xlu0 %249
        %253 = vset.pattern.permute.xlu0 0
        %254 = vperm.xlu0 %253, %v232
        %v255 = vpop.permute.xlu0 %254
        %258 = vset.pattern.permute.xlu0 0
        %259 = vperm.xlu0 %258, %v233
        %v260 = vpop.permute.xlu0 %259
        %263 = vset.pattern.permute.xlu0 0
        %264 = vperm.xlu0 %263, %v234
        %v265 = vpop.permute.xlu0 %264
        %268 = vset.pattern.permute.xlu0 0
        %269 = vperm.xlu0 %268, %v235
        %v270 = vpop.permute.xlu0 %269
        %273 = vset.pattern.permute.xlu0 0
        %274 = vperm.xlu0 %273, %v236
        %v275 = vpop.permute.xlu0 %274
        %vm277 = vcmask 64512
        %v279 = vsel %vm277, %v221, 0
        %v282 = vsel %vm277, %v222, 0
        %v285 = vsel %vm277, %v223, 0
        %v288 = vsel %vm277, %v224, 0
        %v291 = vsel %vm277, %v225, 0
        %v294 = vsel %vm277, %v226, 0
        %v297 = vsel %vm277, %v227, 0
        %v300 = vsel %vm277, %v228, 0
        %302 = vmatpush.msra.mxu0 0.0
        %303 = vmatpush.msra.mxu0 0.0
        %304 = vmatpush.msra.mxu0 0.0
        %305 = vmatpush.msra.mxu0 0.0
        %306 = vmatpush.msra.mxu0 0.0
        %307 = vmatpush.msra.mxu0 0.0
        %308 = vmatpush.msra.mxu0 0.0
        %309 = vmatpush.msra.mxu0 0.0
        %310 = vmatpush.msra.mxu0 0.0
        %311 = vmatpush.msra.mxu0 0.0
        %312 = vmatpush.msra.mxu0 0.0
        %313 = vmatpush.msra.mxu0 0.0
        %314 = vmatpush.msra.mxu0 0.0
        %315 = vmatpush.msra.mxu0 0.0
        %316 = vmatpush.msra.mxu0 0.0
        %317 = vmatpush.msra.mxu0 %v220
        %318 = vmatmul.f32.gmra.mxu0 %v279
        %v319 = vpop.f32.mrf.mxu0
        %v320 = vadd.f32 %v240, %v319
        %321 = vmatmul.f32.gmra.mxu0 %v282
        %v322 = vpop.f32.mrf.mxu0
        %v323 = vadd.f32 %v245, %v322
        %324 = vmatmul.f32.gmra.mxu0 %v285
        %v325 = vpop.f32.mrf.mxu0
        %v326 = vadd.f32 %v250, %v325
        %327 = vmatmul.f32.gmra.mxu0 %v288
        %v328 = vpop.f32.mrf.mxu0
        %v329 = vadd.f32 %v255, %v328
        %330 = vmatmul.f32.gmra.mxu0 %v291
        %v331 = vpop.f32.mrf.mxu0
        %v332 = vadd.f32 %v260, %v331
        %333 = vmatmul.f32.gmra.mxu0 %v294
        %v334 = vpop.f32.mrf.mxu0
        %v335 = vadd.f32 %v265, %v334
        %336 = vmatmul.f32.gmra.mxu0 %v297
        %v337 = vpop.f32.mrf.mxu0
        %v338 = vadd.f32 %v270, %v337
        %339 = vmatmul.f32.gmra.mxu0 %v300
        %v340 = vpop.f32.mrf.mxu0
        %v341 = vadd.f32 %v275, %v340
        %342 = vdwg.mxu0
        %v343 = vmax.f32 %v320, 0.0
        %v344 = vmax.f32 %v323, 0.0
        %v345 = vmax.f32 %v326, 0.0
        %v346 = vmax.f32 %v329, 0.0
        %v347 = vmax.f32 %v332, 0.0
        %v348 = vmax.f32 %v335, 0.0
        %v349 = vmax.f32 %v338, 0.0
        %v350 = vmax.f32 %v341, 0.0
        %v351 = vld [vmem:[%s3] sm:$0xff]
        %v352 = vld [vmem:[%s3 + $0x8] sm:$0xff]
        %v353 = vld [vmem:[%s3 + $0x10] sm:$0xff]
        %v354 = vld [vmem:[%s3 + $0x18] sm:$0xff]
        %v355 = vld [vmem:[%s3 + $0x20] sm:$0xff]
        %v356 = vld [vmem:[%s3 + $0x28] sm:$0xff]
        %v357 = vld [vmem:[%s3 + $0x30] sm:$0xff]
        %v358 = vld [vmem:[%s3 + $0x38] sm:$0xff]
        %360 = vset.pattern.permute.xlu0 0
        %361 = vperm.xlu0 %360, %v351
        %v362 = vpop.permute.xlu0 %361
        %365 = vset.pattern.permute.xlu0 0
        %366 = vperm.xlu0 %365, %v352
        %v367 = vpop.permute.xlu0 %366
        %370 = vset.pattern.permute.xlu0 0
        %371 = vperm.xlu0 %370, %v353
        %v372 = vpop.permute.xlu0 %371
        %375 = vset.pattern.permute.xlu0 0
        %376 = vperm.xlu0 %375, %v354
        %v377 = vpop.permute.xlu0 %376
        %380 = vset.pattern.permute.xlu0 0
        %381 = vperm.xlu0 %380, %v355
        %v382 = vpop.permute.xlu0 %381
        %385 = vset.pattern.permute.xlu0 0
        %386 = vperm.xlu0 %385, %v356
        %v387 = vpop.permute.xlu0 %386
        %390 = vset.pattern.permute.xlu0 0
        %391 = vperm.xlu0 %390, %v357
        %v392 = vpop.permute.xlu0 %391
        %395 = vset.pattern.permute.xlu0 0
        %396 = vperm.xlu0 %395, %v358
        %v397 = vpop.permute.xlu0 %396
        %v399 = vmul.f32 %v343, %v362
        %v400 = vmul.f32 %v344, %v367
        %v401 = vmul.f32 %v345, %v372
        %v402 = vmul.f32 %v346, %v377
        %v403 = vmul.f32 %v347, %v382
        %v404 = vmul.f32 %v348, %v387
        %v405 = vmul.f32 %v349, %v392
        %v406 = vmul.f32 %v350, %v397
        %v407 = vadd.f32 %v399, %v400
        %v408 = vadd.f32 %v407, %v401
        %v409 = vadd.f32 %v408, %v402
        %v410 = vadd.f32 %v409, %v403
        %v411 = vadd.f32 %v410, %v404
        %v412 = vadd.f32 %v411, %v405
        %v413 = vadd.f32 %v412, %v406
        %v414 = vrot.slane %v413, 4
        %v415 = vadd.f32 %v413, %v414
        %v416 = vrot.slane %v415, 2
        %v417 = vadd.f32 %v415, %v416
        %v418 = vrot.slane %v417, 1
        %v419 = vadd.f32 %v417, %v418
        %s420 = sld [smem:[#allocation2]]
        %v421 = vstv %s420
        %v422 = vadd.f32 %v419, %v421
        %423 = vst [vmem:[%s215] sm:$0x1] %v422
        %s424 = sand.u32 %s138, 1
        %s425 = scalar_lea.sflag [#allocation4], %s424
        %s426 = sand.u32 %s138, 1
        %s427 = scalar_lea.vmem [#allocation3], %s426
        // Predicated region
        $region41: #{tpu_custom_call.1} parent=39 // pred_check
          %p428 = pneg %p148
        $region42: #{tpu_custom_call.1} parent=39 // pred_check_branch
          %430 = sbr.rel (%p428) target = $region44
        $region43: #{tpu_custom_call.1} parent=39 // pred_region
          %432 = vsyncadd %s425, 0
          %s433 = scalar_lea.hbm %s5, %s20
          %s435 = sshll.u32 %s427, 4
          %s436 = int_to_ptr.vmem [resolvable:$true] %s435
          %s437 = sshll.u32 %s433, 4
          %s438 = int_to_ptr.hbm [resolvable:$true] %s437
          %440 = dma.vmem_to_hbm [thread:$0]  %s436, 16, %s438, %s425
        $region44: #{tpu_custom_call.1} parent=39 // pred_fallthru
          _
      $region40: #{tpu_custom_call.1} parent=5 // pred_fallthru
        _
      %p441 = scmp.le.s32.totalorder 2, %s15
      // Predicated region
      $region45: #{tpu_custom_call.1} parent=5 // pred_check
        %p442 = pneg %p441
      $region46: #{tpu_custom_call.1} parent=5 // pred_check_branch
        %444 = sbr.rel (%p442) target = $region48
      $region47: #{tpu_custom_call.1} parent=5 // pred_region
        %s445 = ssub.s32 %s15, 2
        // Predicated region
        $region49: #{tpu_custom_call.1} parent=47 // pred_check
          %p446 = pneg %p154
        $region50: #{tpu_custom_call.1} parent=47 // pred_check_branch
          %448 = sbr.rel (%p446) target = $region52
        $region51: #{tpu_custom_call.1} parent=47 // pred_region
          %s449 = sand.u32 %s139, 1
          %s450 = scalar_lea.sflag [#allocation4], %s449
          %s451 = sand.u32 %s139, 1
          %s452 = scalar_lea.vmem [#allocation3], %s451
          %454 = dma.done %s450, 16
        $region52: #{tpu_custom_call.1} parent=47 // pred_fallthru
          _
      $region48: #{tpu_custom_call.1} parent=5 // pred_fallthru
        _
    $region6: #{tpu_custom_call.1} parent=1 // loop_footer
      %s19 = sadd.s32 1, %s15
    $region7: #{tpu_custom_call.1} parent=1 // loop_footer_branch
      %14 = sbr.rel target = $region3
    $region8: #{tpu_custom_call.1} parent=1 // loop_exit
      _
    %455 = vsyncpa [#allocation4], 1
    %s456 = scalar_lea.sflag [#allocation4], 1
    %457 = vsyncpa %s456, 1

</llo_original>
